<compile_context>
chip_gen: v5e
topology: v5e:2x2
jax: 0.10.0
libtpu: 0.0.40
codegen_flags: <defaults>
</compile_context>

<pallas_src>
import functools

import jax
import jax.numpy as jnp
from jax import lax
from jax.experimental import pallas as pl
from jax.experimental.pallas import tpu as pltpu


def _mlr_head_kernel(x_ref, w_ref, b_ref, dconst_ref, out_ref, *, training):
    """Fused (x @ W.T + b) -> modified-logistic epilogue.

    x_ref:      (tm, tk)  activations tile
    w_ref:      (tn, tk)  weight tile, native PyTorch (C, F) layout
    b_ref:      (1,  tn)  bias
    dconst_ref: (1,  tn)  precomputed 1 + beta^2 + eps (f32)
    out_ref:    (tm, tn)  f32 output tile, doubles as the K accumulator
    """
    k = pl.program_id(2)

    partial = lax.dot_general(
        x_ref[...], w_ref[...],
        dimension_numbers=(((1,), (1,)), ((), ())),   # contract F with F
        preferred_element_type=jnp.float32,
    )

    @pl.when(k == 0)
    def _():
        out_ref[...] = partial

    @pl.when(k != 0)
    def _():
        out_ref[...] += partial

    @pl.when(k == pl.num_programs(2) - 1)
    def _():
        logits = out_ref[...] + b_ref[...]
        dconst = dconst_ref[...]                      # 1 + beta^2 + eps
        denom = dconst + jnp.exp(-logits)
        inv = pl.reciprocal(denom, approx=False)      # EUP slot, off the VPU
        if training:
            out_ref[...] = inv
        else:
            out_ref[...] = dconst * inv


def _round_up(x, m):
    return (x + m - 1) // m * m


def _pad2(a, rows, cols):
    pr, pc = rows - a.shape[0], cols - a.shape[1]
    if pr or pc:
        a = jnp.pad(a, ((0, pr), (0, pc)))
    return a


def modified_logreg_head(x, weight, bias, beta_per_class, *,
                         eps=1e-8, training=True):
    """Pallas implementation of ModifiedLogisticRegression_Head.forward.

    x:               (N, F)  activations (f32 or bf16)
    weight:          (C, F)  nn.Linear weight, native PyTorch layout
    bias:            (C,)    nn.Linear bias (or None)
    beta_per_class:  (C,)    per-class beta
    """
    N, F = x.shape
    C, Fw = weight.shape
    assert Fw == F

    if bias is None:
        bias = jnp.zeros((C,), jnp.float32)
    bias = bias.astype(jnp.float32).reshape(1, C)
    # TODO(synk): PyTorch keeps beta_per_class in float64; computed in f32 on TPU.
    beta = beta_per_class.astype(jnp.float32).reshape(1, C)
    dconst = 1.0 + beta * beta + jnp.float32(eps)     # O(C) wrapper-only cost

    # ---- tile selection ----------------------------------------------------
    x_isz = jnp.dtype(x.dtype).itemsize
    w_isz = jnp.dtype(weight.dtype).itemsize
    row_mult = 8 * max(1, 4 // x_isz)                 # 8 f32 / 16 bf16 / 32 int8
    tm = min(_round_up(N, row_mult), 256)
    tn = min(_round_up(C, 128), 1024)
    tk = min(_round_up(F, 128), 2048)

    # Keep >=2 parallel class-blocks when the batch axis has only one block
    # (v7x megacore: both TensorCores stay busy).
    if _round_up(N, tm) // tm == 1 and C > 128:
        tn = min(tn, max(128, _round_up((C + 1) // 2, 128)))

    Np, Cp, Fp = _round_up(N, tm), _round_up(C, tn), _round_up(F, tk)

    # Zero-pad only when needed (K padding is exact; padded N/C sliced off).
    x_p = _pad2(x, Np, Fp)
    w_p = _pad2(weight, Cp, Fp)                       # native (C, F), no transpose
    b_p = _pad2(bias, 1, Cp)
    d_p = _pad2(dconst, 1, Cp)

    grid = (Np // tm, Cp // tn, Fp // tk)

    # VMEM budget: double-buffered x/W tiles + double-buffered f32 output tile
    # (which is also the accumulator) + tiny bias/const vectors.
    est = (2 * (tm * tk * x_isz + tn * tk * w_isz)
           + 2 * tm * tn * 4 + 4 * tn * 4)
    vmem_limit = int(min(max(est + est // 4 + (2 << 20), 16 << 20), 48 << 20))

    kernel = functools.partial(_mlr_head_kernel, training=bool(training))

    out = pl.pallas_call(
        kernel,
        out_shape=jax.ShapeDtypeStruct((Np, Cp), jnp.float32),
        grid_spec=pltpu.PrefetchScalarGridSpec(
            num_scalar_prefetch=0,
            grid=grid,
            in_specs=[
                pl.BlockSpec((tm, tk), lambda i, j, k: (i, k)),   # x
                pl.BlockSpec((tn, tk), lambda i, j, k: (j, k)),   # W (C, F)
                pl.BlockSpec((1, tn), lambda i, j, k: (0, j)),    # bias
                pl.BlockSpec((1, tn), lambda i, j, k: (0, j)),    # 1+beta^2+eps
            ],
            out_specs=pl.BlockSpec((tm, tn), lambda i, j, k: (i, j)),
        ),
        compiler_params=pltpu.CompilerParams(
            dimension_semantics=("parallel", "parallel", "arbitrary"),
            vmem_limit_bytes=vmem_limit,
        ),
    )(x_p, w_p, b_p, d_p)

    if (Np, Cp) != (N, C):
        out = out[:N, :C]
    return out


def _ref(x, weight, bias, beta, eps=1e-8, training=True):
    # Pure-JAX reference mirroring the PyTorch forward (f32).
    logits = (x.astype(jnp.float32) @ weight.T.astype(jnp.float32)
              + bias.astype(jnp.float32))
    beta2 = beta.astype(jnp.float32) ** 2
    c_hat_inv = 1.0 if training else 1.0 + beta2 + eps
    return c_hat_inv / (1.0 + beta2 + jnp.exp(-logits) + eps)


if __name__ == "__main__":
    key = jax.random.PRNGKey(0)
    k1, k2, k3, k4 = jax.random.split(key, 4)

    N, F, C = 8, 32, 256   # small (batch, num_features, num_classes)
    x = jax.random.normal(k1, (N, F), dtype=jnp.float32)
    weight = jax.random.normal(k2, (C, F), dtype=jnp.float32) * 0.1
    bias = jax.random.normal(k3, (C,), dtype=jnp.float32) * 0.1
    beta = 1.0 + 0.1 * jax.random.normal(k4, (C,), dtype=jnp.float32)

    ok = True
    for training in (True, False):
        out = modified_logreg_head(x, weight, bias, beta,
                                   eps=1e-8, training=training)
        out = jax.block_until_ready(out)
        ref = _ref(x, weight, bias, beta, eps=1e-8, training=training)
        ok &= bool(jnp.allclose(out, ref, rtol=1e-5, atol=1e-5))

    assert ok
    print("KERNEL_OK")
</pallas_src>

<mosaic_0001>
module attributes {stable_mosaic.version = 11 : i64} {
  func.func @_mlr_head_kernel(%arg0: i32, %arg1: i32, %arg2: i32, %arg3: memref<8x128xf32, #tpu.memory_space<vmem>>, %arg4: memref<128x128xf32, #tpu.memory_space<vmem>>, %arg5: memref<1x128xf32, #tpu.memory_space<vmem>>, %arg6: memref<1x128xf32, #tpu.memory_space<vmem>>, %arg7: memref<8x128xf32, #tpu.memory_space<vmem>>) attributes {dimension_semantics = [#tpu.dimension_semantics<parallel>, #tpu.dimension_semantics<parallel>, #tpu.dimension_semantics<arbitrary>], iteration_bounds = array<i64: 1, 2, 1>, scalar_prefetch = 0 : i64, scratch_operands = 0 : i64, tpu.core_type = #tpu.core_type<tc>, window_params = [{transform_indices = @transform_0, window_bounds = array<i64: 8, 128>}, {transform_indices = @transform_1, window_bounds = array<i64: 128, 128>}, {transform_indices = @transform_2, window_bounds = array<i64: 1, 128>}, {transform_indices = @transform_3, window_bounds = array<i64: 1, 128>}, {transform_indices = @transform_4, window_bounds = array<i64: 8, 128>}]} {
    %c0 = arith.constant 0 : index
    %c0_0 = arith.constant 0 : index
    %0 = vector.load %arg3[%c0, %c0_0] : memref<8x128xf32, #tpu.memory_space<vmem>>, vector<8x128xf32>
    %c0_1 = arith.constant 0 : index
    %c0_2 = arith.constant 0 : index
    %1 = vector.load %arg4[%c0_1, %c0_2] : memref<128x128xf32, #tpu.memory_space<vmem>>, vector<128x128xf32>
    %cst = arith.constant dense<0.000000e+00> : vector<8x128xf32>
    %2 = tpu.matmul %0, %1, %cst {dimension_numbers = #tpu.dot_dimension_numbers<[1], [1], [0], [0], [0, 0, 1, 0], [], []>} : vector<8x128xf32>, vector<128x128xf32>, vector<8x128xf32> -> vector<8x128xf32>
    %c0_i32 = arith.constant 0 : i32
    %3 = arith.cmpi eq, %arg2, %c0_i32 : i32
    %4 = arith.extui %3 : i1 to i32
    %c0_i32_3 = arith.constant 0 : i32
    %5 = arith.cmpi ne, %4, %c0_i32_3 : i32
    scf.if %5 {
      %c0_8 = arith.constant 0 : index
      %c0_9 = arith.constant 0 : index
      %12 = vector.load %arg7[%c0_8, %c0_9] : memref<8x128xf32, #tpu.memory_space<vmem>>, vector<8x128xf32>
      tpu.vector_store %arg7[%c0_8, %c0_9], %2 {strides = array<i32>} : memref<8x128xf32, #tpu.memory_space<vmem>>, vector<8x128xf32>,
    } else {
    }
    %c0_i32_4 = arith.constant 0 : i32
    %6 = arith.cmpi ne, %arg2, %c0_i32_4 : i32
    %7 = arith.extui %6 : i1 to i32
    %c0_i32_5 = arith.constant 0 : i32
    %8 = arith.cmpi ne, %7, %c0_i32_5 : i32
    scf.if %8 {
      %c0_8 = arith.constant 0 : index
      %c0_9 = arith.constant 0 : index
      %12 = vector.load %arg7[%c0_8, %c0_9] : memref<8x128xf32, #tpu.memory_space<vmem>>, vector<8x128xf32>
      %13 = arith.addf %12, %2 : vector<8x128xf32>
      %c0_10 = arith.constant 0 : index
      %c0_11 = arith.constant 0 : index
      %14 = vector.load %arg7[%c0_10, %c0_11] : memref<8x128xf32, #tpu.memory_space<vmem>>, vector<8x128xf32>
      tpu.vector_store %arg7[%c0_10, %c0_11], %13 {strides = array<i32>} : memref<8x128xf32, #tpu.memory_space<vmem>>, vector<8x128xf32>,
    } else {
    }
    %c0_i32_6 = arith.constant 0 : i32
    %9 = arith.cmpi eq, %arg2, %c0_i32_6 : i32
    %10 = arith.extui %9 : i1 to i32
    %c0_i32_7 = arith.constant 0 : i32
    %11 = arith.cmpi ne, %10, %c0_i32_7 : i32
    scf.if %11 {
      %c0_8 = arith.constant 0 : index
      %c0_9 = arith.constant 0 : index
      %12 = vector.load %arg7[%c0_8, %c0_9] : memref<8x128xf32, #tpu.memory_space<vmem>>, vector<8x128xf32>
      %c0_10 = arith.constant 0 : index
      %c0_11 = arith.constant 0 : index
      %13 = vector.load %arg5[%c0_10, %c0_11] : memref<1x128xf32, #tpu.memory_space<vmem>>, vector<1x128xf32>
      %14 = vector.broadcast %13 : vector<1x128xf32> to vector<8x128xf32>
      %15 = arith.addf %12, %14 : vector<8x128xf32>
      %c0_12 = arith.constant 0 : index
      %c0_13 = arith.constant 0 : index
      %16 = vector.load %arg6[%c0_12, %c0_13] : memref<1x128xf32, #tpu.memory_space<vmem>>, vector<1x128xf32>
      %cst_14 = arith.constant 0.000000e+00 : f32
      %17 = vector.broadcast %cst_14 : f32 to vector<8x128xf32>
      %18 = arith.subf %17, %15 : vector<8x128xf32>
      %19 = math.exp %18 : vector<8x128xf32>
      %20 = vector.broadcast %16 : vector<1x128xf32> to vector<8x128xf32>
      %21 = arith.addf %20, %19 : vector<8x128xf32>
      %22 = tpu.reciprocal %21 : vector<8x128xf32> -> vector<8x128xf32>
      %c0_15 = arith.constant 0 : index
      %c0_16 = arith.constant 0 : index
      %23 = vector.load %arg7[%c0_15, %c0_16] : memref<8x128xf32, #tpu.memory_space<vmem>>, vector<8x128xf32>
      tpu.vector_store %arg7[%c0_15, %c0_16], %22 {strides = array<i32>} : memref<8x128xf32, #tpu.memory_space<vmem>>, vector<8x128xf32>,
    } else {
    }
    return
  }
  func.func @transform_0(%arg0: i32, %arg1: i32, %arg2: i32) -> (i32, i32) {
    %c0_i32 = arith.constant 0 : i32
    return %arg0, %arg2 : i32, i32
  }
  func.func @transform_1(%arg0: i32, %arg1: i32, %arg2: i32) -> (i32, i32) {
    %c0_i32 = arith.constant 0 : i32
    return %arg1, %arg2 : i32, i32
  }
  func.func @transform_2(%arg0: i32, %arg1: i32, %arg2: i32) -> (i32, i32) {
    %c0_i32 = arith.constant 0 : i32
    %c0_i32_0 = arith.constant 0 : i32
    return %c0_i32, %arg1 : i32, i32
  }
  func.func @transform_3(%arg0: i32, %arg1: i32, %arg2: i32) -> (i32, i32) {
    %c0_i32 = arith.constant 0 : i32
    %c0_i32_0 = arith.constant 0 : i32
    return %c0_i32, %arg1 : i32, i32
  }
  func.func @transform_4(%arg0: i32, %arg1: i32, %arg2: i32) -> (i32, i32) {
    %c0_i32 = arith.constant 0 : i32
    return %arg0, %arg1 : i32, i32
  }
}

</mosaic_0001>

<llo_original>
// kernel: tpu_custom_call.1
$region0: #{tpu_custom_call.1}
  #allocation0 [shape = 'u32[]', space=smem, size = 0x4, offset = 0x4, fixed_abs, tag = 'smem constant byte address 0x4 - core index']
  #allocation1 [shape = 'u32[72,128]{1,0:T(1,128)}', space=vmem, size = 0x9000, scoped, tag = 'internal scratch']
  %s0 = inlined_call_operand.hbm [shape: f32[8,128], index: 0, kind: input, shape index: {}]
  %s1 = inlined_call_operand.hbm [shape: f32[256,128], index: 1, kind: input, shape index: {}]
  %s2 = inlined_call_operand.hbm [shape: f32[1,256], index: 2, kind: input, shape index: {}]
  %s3 = inlined_call_operand.vmem [shape: f32[1,256], index: 3, kind: input, shape index: {}]
  %s4 = inlined_call_operand.hbm [shape: f32[8,256], index: 4, kind: output, shape index: {}]
  %s5 = sld [smem:[#allocation0]]
  $region73: #{tpu_custom_call.1} parent=0
    _
  %s7 = ssub.s32 1, %s5
  %s8 = scalar_select 0, %s7, %s5
  $region1: #{tpu_custom_call.1} parent=0
    #allocation2 [shape = 'u8[4096]{0}', space=vmem, size = 0x1000, scoped, tag = 'input window, operand 0, single buffered']
    #allocation3 [shape = 's32[2]{0}', space=sflag, size = 0x8, scoped, tag = 'scoped memory for tpu_custom_call.1']
    #allocation4 [shape = 's32[2]{0}', space=sflag, size = 0x8, scoped, tag = 'scoped memory for tpu_custom_call.1']
    #allocation5 [shape = 'u8[131072]{0}', space=vmem, size = 0x20000, scoped, tag = 'input window, operand 1']
    #allocation6 [shape = 's32[2]{0}', space=sflag, size = 0x8, scoped, tag = 'scoped memory for tpu_custom_call.1']
    #allocation7 [shape = 'u8[1024]{0}', space=vmem, size = 0x400, scoped, tag = 'input window, operand 2']
    #allocation8 [shape = 'u8[8192]{0}', space=vmem, size = 0x2000, scoped, tag = 'output window, operand 0']
    %9 = vsyncpa [#allocation3], 0
    %10 = vsyncpa [#allocation6], 0
    %s11 = scalar_lea.sflag [#allocation6], 1
    %12 = vsyncpa %s11, 0
    %13 = vsyncpa [#allocation4], 0
    %s14 = scalar_lea.sflag [#allocation4], 1
    %15 = vsyncpa %s14, 0
    loop: start=0, step=1, limit=4
    $region2: #{tpu_custom_call.1} parent=1 // loop_pre_header
      _
    $region3: #{tpu_custom_call.1} parent=1 // loop_header
      %s17 = sphi 0, %s21
      %p18 = scmp.ge.s32.totalorder %s17, 4
      %s24 = sphi 0, %s43
      %s25 = sphi 0, %s39
      %s26 = sphi 0, %s35
      %s27 = sphi 0, %s24
      %s28 = sphi 0, %s25
      %s29 = sphi 0, %s26
      %s30 = sphi 0, %s27
      %s31 = sphi 0, %s28
      %s32 = sphi 0, %s29
      %s48 = sphi 0, %s50
      %s51 = sphi 0, %s48
      %s52 = sphi 0, %s51
      %s68 = sphi 0, %s52
      %s76 = sphi 0, %s78
      %s79 = sphi 0, %s76
      %s80 = sphi 0, %s79
      %s96 = sphi 0, %s80
      %s102 = sphi 0, %s104
      %s105 = sphi 0, %s102
      %s106 = sphi 0, %s105
      %s122 = sphi 0, %s106
      %s128 = sphi 0, %s130
      %s131 = sphi 0, %s128
      %s132 = sphi 0, %s131
      %s148 = sphi 0, %s132
      %s156 = sphi 0, %s158
      %s159 = sphi 0, %s156
      %s160 = sphi 0, %s159
      %s176 = sphi 0, %s160
    $region4: #{tpu_custom_call.1} parent=1 // loop_header_branch
      %20 = sbr.rel (%p18) target = $region8
    $region5: #{tpu_custom_call.1} parent=1 // loop_body
      %s22 = ssub.s32 %s17, 1
      %s23 = ssub.s32 %s17, 2
      %s33 = sadd.s32 1, %s26
      %p34 = scmp.ge.s32.totalorder %s33, 1
      %s35 = scalar_select %p34, 0, %s33
      %s36 = sadd.s32 1, %s25
      %s37 = scalar_select %p34, %s36, %s25
      %p38 = scmp.ge.s32.totalorder %s37, 2
      %s39 = scalar_select %p38, 0, %s37
      %s40 = sadd.s32 1, %s24
      %s41 = scalar_select %p38, %s40, %s24
      %p42 = scmp.ge.s32.totalorder %s41, 1
      %s43 = scalar_select %p42, 0, %s41
      %s44 = ssub.s32 %s24, %s43
      %s45 = ssub.s32 %s26, %s35
      %s46 = sor.u32 %s44, %s45
      %p47 = scmp.eq.s32.totalorder %s46, 0
      %s49 = sadd.s32 %s48, 1
      %s50 = scalar_select %p47, %s48, %s49
      %p53 = pneg %p47
      %p54 = scmp.eq.s32.totalorder %s17, 1
      %p55 = por %p53, %p54
      %p56 = scmp.ne.s32.totalorder %s48, %s51
      %p57 = scmp.eq.s32.totalorder %s17, 0
      %p58 = por %p56, %p57
      %p59 = scmp.ne.s32.totalorder %s48, %s51
      %p60 = scmp.eq.s32.totalorder %s22, 1
      %p61 = por %p59, %p60
      %p62 = scmp.ne.s32.totalorder %s51, %s52
      %p63 = scmp.eq.s32.totalorder %s22, 0
      %p64 = por %p62, %p63
      %p65 = scmp.ne.s32.totalorder %s51, %s52
      %p66 = scmp.eq.s32.totalorder %s23, 1
      %p67 = por %p65, %p66
      %p69 = scmp.ne.s32.totalorder %s52, %s68
      %p70 = scmp.eq.s32.totalorder %s23, 0
      %p71 = por %p69, %p70
      %s72 = ssub.s32 %s25, %s39
      %s73 = ssub.s32 %s26, %s35
      %s74 = sor.u32 %s72, %s73
      %p75 = scmp.eq.s32.totalorder %s74, 0
      %s77 = sadd.s32 %s76, 1
      %s78 = scalar_select %p75, %s76, %s77
      %p81 = pneg %p75
      %p82 = scmp.eq.s32.totalorder %s17, 1
      %p83 = por %p81, %p82
      %p84 = scmp.ne.s32.totalorder %s76, %s79
      %p85 = scmp.eq.s32.totalorder %s17, 0
      %p86 = por %p84, %p85
      %p87 = scmp.ne.s32.totalorder %s76, %s79
      %p88 = scmp.eq.s32.totalorder %s22, 1
      %p89 = por %p87, %p88
      %p90 = scmp.ne.s32.totalorder %s79, %s80
      %p91 = scmp.eq.s32.totalorder %s22, 0
      %p92 = por %p90, %p91
      %p93 = scmp.ne.s32.totalorder %s79, %s80
      %p94 = scmp.eq.s32.totalorder %s23, 1
      %p95 = por %p93, %p94
      %p97 = scmp.ne.s32.totalorder %s80, %s96
      %p98 = scmp.eq.s32.totalorder %s23, 0
      %p99 = por %p97, %p98
      %s100 = ssub.s32 %s25, %s39
      %p101 = scmp.eq.s32.totalorder %s100, 0
      %s103 = sadd.s32 %s102, 1
      %s104 = scalar_select %p101, %s102, %s103
      %p107 = pneg %p101
      %p108 = scmp.eq.s32.totalorder %s17, 1
      %p109 = por %p107, %p108
      %p110 = scmp.ne.s32.totalorder %s102, %s105
      %p111 = scmp.eq.s32.totalorder %s17, 0
      %p112 = por %p110, %p111
      %p113 = scmp.ne.s32.totalorder %s102, %s105
      %p114 = scmp.eq.s32.totalorder %s22, 1
      %p115 = por %p113, %p114
      %p116 = scmp.ne.s32.totalorder %s105, %s106
      %p117 = scmp.eq.s32.totalorder %s22, 0
      %p118 = por %p116, %p117
      %p119 = scmp.ne.s32.totalorder %s105, %s106
      %p120 = scmp.eq.s32.totalorder %s23, 1
      %p121 = por %p119, %p120
      %p123 = scmp.ne.s32.totalorder %s106, %s122
      %p124 = scmp.eq.s32.totalorder %s23, 0
      %p125 = por %p123, %p124
      %s126 = ssub.s32 %s25, %s39
      %p127 = scmp.eq.s32.totalorder %s126, 0
      %s129 = sadd.s32 %s128, 1
      %s130 = scalar_select %p127, %s128, %s129
      %p133 = pneg %p127
      %p134 = scmp.eq.s32.totalorder %s17, 1
      %p135 = por %p133, %p134
      %p136 = scmp.ne.s32.totalorder %s128, %s131
      %p137 = scmp.eq.s32.totalorder %s17, 0
      %p138 = por %p136, %p137
      %p139 = scmp.ne.s32.totalorder %s128, %s131
      %p140 = scmp.eq.s32.totalorder %s22, 1
      %p141 = por %p139, %p140
      %p142 = scmp.ne.s32.totalorder %s131, %s132
      %p143 = scmp.eq.s32.totalorder %s22, 0
      %p144 = por %p142, %p143
      %p145 = scmp.ne.s32.totalorder %s131, %s132
      %p146 = scmp.eq.s32.totalorder %s23, 1
      %p147 = por %p145, %p146
      %p149 = scmp.ne.s32.totalorder %s132, %s148
      %p150 = scmp.eq.s32.totalorder %s23, 0
      %p151 = por %p149, %p150
      %s152 = ssub.s32 %s24, %s43
      %s153 = ssub.s32 %s25, %s39
      %s154 = sor.u32 %s152, %s153
      %p155 = scmp.eq.s32.totalorder %s154, 0
      %s157 = sadd.s32 %s156, 1
      %s158 = scalar_select %p155, %s156, %s157
      %p161 = pneg %p155
      %p162 = scmp.eq.s32.totalorder %s17, 1
      %p163 = por %p161, %p162
      %p164 = scmp.ne.s32.totalorder %s156, %s159
      %p165 = scmp.eq.s32.totalorder %s17, 0
      %p166 = por %p164, %p165
      %p167 = scmp.ne.s32.totalorder %s156, %s159
      %p168 = scmp.eq.s32.totalorder %s22, 1
      %p169 = por %p167, %p168
      %p170 = scmp.ne.s32.totalorder %s159, %s160
      %p171 = scmp.eq.s32.totalorder %s22, 0
      %p172 = por %p170, %p171
      %p173 = scmp.ne.s32.totalorder %s159, %s160
      %p174 = scmp.eq.s32.totalorder %s23, 1
      %p175 = por %p173, %p174
      %p177 = scmp.ne.s32.totalorder %s160, %s176
      %p178 = scmp.eq.s32.totalorder %s23, 0
      %p179 = por %p177, %p178
      %p180 = scmp.le.s32.totalorder 1, %s17
      %p181 = scmp.lt.s32.totalorder %s17, 3
      %p182 = pnand %p180, %p181
      %p183 = pneg %p182
      // Predicated region
      $region9: #{tpu_custom_call.1} parent=5 // pred_check
        _
      $region10: #{tpu_custom_call.1} parent=5 // pred_check_branch
        %185 = sbr.rel (%p182) target = $region12
      $region11: #{tpu_custom_call.1} parent=5 // pred_region
        %s186 = ssub.s32 %s17, 1
        // Predicated region
        $region13: #{tpu_custom_call.1} parent=11 // pred_check
          %p187 = pneg %p64
        $region14: #{tpu_custom_call.1} parent=11 // pred_check_branch
          %189 = sbr.rel (%p187) target = $region16
        $region15: #{tpu_custom_call.1} parent=11 // pred_region
          %191 = vsyncadd [#allocation3], 0
          %s192 = sadd.s32 %s29, %s27
          %s193 = smul.addr %s192, 8
          %s194 = scalar_lea.hbm %s0, %s193
          %s196 = sshll.u32 %s194, 4
          %s197 = int_to_ptr.hbm [resolvable:$true] %s196
          %s198 = sshll.u32 [#allocation2], 4
          %s199 = int_to_ptr.vmem [resolvable:$true] %s198
          %201 = dma.hbm_to_vmem [thread:$0]  %s197, 128, %s199, [#allocation3]
        $region16: #{tpu_custom_call.1} parent=11 // pred_fallthru
          _
      $region12: #{tpu_custom_call.1} parent=5 // pred_fallthru
        _
      %p202 = scmp.lt.s32.totalorder %s17, 2
      // Predicated region
      $region17: #{tpu_custom_call.1} parent=5 // pred_check
        %p203 = pneg %p202
      $region18: #{tpu_custom_call.1} parent=5 // pred_check_branch
        %205 = sbr.rel (%p203) target = $region20
      $region19: #{tpu_custom_call.1} parent=5 // pred_region
        // Predicated region
        $region21: #{tpu_custom_call.1} parent=19 // pred_check
          %p206 = pneg %p86
        $region22: #{tpu_custom_call.1} parent=19 // pred_check_branch
          %208 = sbr.rel (%p206) target = $region24
        $region23: #{tpu_custom_call.1} parent=19 // pred_region
          %s209 = sand.u32 %s17, 1
          %s210 = scalar_lea.sflag [#allocation6], %s209
          %s211 = sand.u32 %s76, 1
          %s212 = smul.addr %s211, 128
          %s213 = scalar_lea.vmem [#allocation5], %s212
          %s214 = smul.u32 16, %s25
          %216 = vsyncadd %s210, 0
          %s217 = sadd.s32 %s26, %s214
          %s218 = smul.addr %s217, 8
          %s219 = scalar_lea.hbm %s1, %s218
          %s220 = sshll.u32 %s219, 4
          %s221 = int_to_ptr.hbm [resolvable:$true] %s220
          %s222 = sshll.u32 %s213, 4
          %s223 = int_to_ptr.vmem [resolvable:$true] %s222
          %228 = dma.hbm_to_vmem [thread:$0]  %s221, 2048, %s223, %s210, 128, 128, 8
        $region24: #{tpu_custom_call.1} parent=19 // pred_fallthru
          _
        // Predicated region
        $region25: #{tpu_custom_call.1} parent=19 // pred_check
          %p229 = pneg %p112
        $region26: #{tpu_custom_call.1} parent=19 // pred_check_branch
          %231 = sbr.rel (%p229) target = $region28
        $region27: #{tpu_custom_call.1} parent=19 // pred_region
          %s232 = sand.u32 %s17, 1
          %s233 = scalar_lea.sflag [#allocation6], %s232
          %s234 = sand.u32 %s102, 1
          %s235 = scalar_lea.vmem [#allocation7], %s234
          %237 = vsyncadd %s233, 0
          %s238 = scalar_lea.hbm %s2, %s25
          %s240 = sshll.u32 %s238, 4
          %s241 = int_to_ptr.hbm [resolvable:$true] %s240
          %s242 = sshll.u32 %s235, 4
          %s243 = int_to_ptr.vmem [resolvable:$true] %s242
          %245 = dma.hbm_to_vmem [thread:$0]  %s241, 16, %s243, %s233
        $region28: #{tpu_custom_call.1} parent=19 // pred_fallthru
          _
        // Predicated region
        $region29: #{tpu_custom_call.1} parent=19 // pred_check
          %p246 = pneg %p138
        $region30: #{tpu_custom_call.1} parent=19 // pred_check_branch
          %248 = sbr.rel (%p246) target = $region32
        $region31: #{tpu_custom_call.1} parent=19 // pred_region
          %p249 = scmp.lt.s32.totalorder %s25, 1
          %s250 = scalar_select %p249, %s25, 1
          %s251 = scalar_lea.vmem %s3, %s250
        $region32: #{tpu_custom_call.1} parent=19 // pred_fallthru
          _
      $region20: #{tpu_custom_call.1} parent=5 // pred_fallthru
        _
      %p252 = scmp.le.s32.totalorder 1, %s17
      %p253 = scmp.lt.s32.totalorder %s17, 3
      %p254 = pnand %p252, %p253
      %p255 = pneg %p254
      // Predicated region
      $region33: #{tpu_custom_call.1} parent=5 // pred_check
        _
      $region34: #{tpu_custom_call.1} parent=5 // pred_check_branch
        %257 = sbr.rel (%p254) target = $region36
      $region35: #{tpu_custom_call.1} parent=5 // pred_region
        %s258 = ssub.s32 %s17, 1
        // Predicated region
        $region37: #{tpu_custom_call.1} parent=35 // pred_check
          %p259 = pneg %p64
        $region38: #{tpu_custom_call.1} parent=35 // pred_check_branch
          %261 = sbr.rel (%p259) target = $region40
        $region39: #{tpu_custom_call.1} parent=35 // pred_region
          %263 = dma.done [#allocation3], 128
        $region40: #{tpu_custom_call.1} parent=35 // pred_fallthru
          _
        %s264 = sand.u32 %s22, 1
        %s265 = scalar_lea.sflag [#allocation6], %s264
        %s266 = sand.u32 %s79, 1
        %s267 = smul.addr %s266, 128
        %s268 = scalar_lea.vmem [#allocation5], %s267
        // Predicated region
        $region41: #{tpu_custom_call.1} parent=35 // pred_check
          %p269 = pneg %p92
        $region42: #{tpu_custom_call.1} parent=35 // pred_check_branch
          %271 = sbr.rel (%p269) target = $region44
        $region43: #{tpu_custom_call.1} parent=35 // pred_region
          %273 = dma.done %s265, 2048
        $region44: #{tpu_custom_call.1} parent=35 // pred_fallthru
          _
        %s274 = sand.u32 %s22, 1
        %s275 = scalar_lea.sflag [#allocation6], %s274
        %s276 = sand.u32 %s105, 1
        %s277 = scalar_lea.vmem [#allocation7], %s276
        // Predicated region
        $region45: #{tpu_custom_call.1} parent=35 // pred_check
          %p278 = pneg %p118
        $region46: #{tpu_custom_call.1} parent=35 // pred_check_branch
          %280 = sbr.rel (%p278) target = $region48
        $region47: #{tpu_custom_call.1} parent=35 // pred_region
          %282 = dma.done %s275, 16
        $region48: #{tpu_custom_call.1} parent=35 // pred_fallthru
          _
        %p283 = pneg %p64
        %p284 = pneg %p61
        %s285 = sand.u32 %s22, 1
        %s286 = scalar_lea.sflag [#allocation6], %s285
        %s287 = sand.u32 %s79, 1
        %s288 = smul.addr %s287, 128
        %s289 = scalar_lea.vmem [#allocation5], %s288
        %p290 = pneg %p92
        %p291 = pneg %p89
        %s292 = sand.u32 %s22, 1
        %s293 = scalar_lea.sflag [#allocation6], %s292
        %s294 = sand.u32 %s105, 1
        %s295 = scalar_lea.vmem [#allocation7], %s294
        %p296 = pneg %p118
        %p297 = pneg %p115
        %p298 = scmp.lt.s32.totalorder %s28, 1
        %s299 = scalar_select %p298, %s28, 1
        %s300 = scalar_lea.vmem %s3, %s299
        %p301 = pneg %p144
        %p302 = pneg %p141
        %p303 = pneg %p172
        %p304 = pneg %p169
        %s305 = sand.u32 %s159, 1
        %s306 = scalar_lea.sflag [#allocation4], %s305
        %s307 = sand.u32 %s159, 1
        %s308 = smul.addr %s307, 8
        %s309 = scalar_lea.vmem [#allocation8], %s308
        %s310 = smul.u32 16, %s28
        %p311 = scmp.lt.s32.totalorder %s28, 1
        %s312 = scalar_select %p311, %s28, 1
        %s313 = scalar_lea.vmem %s3, %s312
        %v314 = vld [vmem:[#allocation2] sm:$0xff]
        %v315 = vld [vmem:[%s268] sm:$0xff]
        %v316 = vld [vmem:[%s268 + $0x8] sm:$0xff]
        %v317 = vld [vmem:[%s268 + $0x10] sm:$0xff]
        %v318 = vld [vmem:[%s268 + $0x18] sm:$0xff]
        %v319 = vld [vmem:[%s268 + $0x20] sm:$0xff]
        %v320 = vld [vmem:[%s268 + $0x28] sm:$0xff]
        %v321 = vld [vmem:[%s268 + $0x30] sm:$0xff]
        %v322 = vld [vmem:[%s268 + $0x38] sm:$0xff]
        %v323 = vld [vmem:[%s268 + $0x40] sm:$0xff]
        %v324 = vld [vmem:[%s268 + $0x48] sm:$0xff]
        %v325 = vld [vmem:[%s268 + $0x50] sm:$0xff]
        %v326 = vld [vmem:[%s268 + $0x58] sm:$0xff]
        %v327 = vld [vmem:[%s268 + $0x60] sm:$0xff]
        %v328 = vld [vmem:[%s268 + $0x68] sm:$0xff]
        %v329 = vld [vmem:[%s268 + $0x70] sm:$0xff]
        %v330 = vld [vmem:[%s268 + $0x78] sm:$0xff]
        %331 = vmatpush.xpose.msra.mxu0 %v330
        %332 = vmatpush.xpose.msra.mxu0 %v329
        %333 = vmatpush.xpose.msra.mxu0 %v328
        %334 = vmatpush.xpose.msra.mxu0 %v327
        %335 = vmatpush.xpose.msra.mxu0 %v326
        %336 = vmatpush.xpose.msra.mxu0 %v325
        %337 = vmatpush.xpose.msra.mxu0 %v324
        %338 = vmatpush.xpose.msra.mxu0 %v323
        %339 = vmatpush.xpose.msra.mxu0 %v322
        %340 = vmatpush.xpose.msra.mxu0 %v321
        %341 = vmatpush.xpose.msra.mxu0 %v320
        %342 = vmatpush.xpose.msra.mxu0 %v319
        %343 = vmatpush.xpose.msra.mxu0 %v318
        %344 = vmatpush.xpose.msra.mxu0 %v317
        %345 = vmatpush.xpose.msra.mxu0 %v316
        %346 = vmatpush.xpose.msra.mxu0 %v315
        %347 = vmatmul.f32.gmra.mxu0 %v314
        %v348 = vpop.f32.mrf.mxu0
        %v349 = vadd.f32 0.0, %v348
        %350 = vdwg.mxu0
        %p351 = scmp.eq.s32.totalorder %s29, 0
        // Predicated region
        $region49: #{tpu_custom_call.1} parent=35 // pred_check
          %p352 = pneg %p351
        $region50: #{tpu_custom_call.1} parent=35 // pred_check_branch
          %354 = sbr.rel (%p352) target = $region52
        $region51: #{tpu_custom_call.1} parent=35 // pred_region
          %355 = vst [vmem:[%s309] sm:$0xff] %v349
        $region52: #{tpu_custom_call.1} parent=35 // pred_fallthru
          _
        %p356 = scmp.ne.s32.totalorder %s29, 0
        // Predicated region
        $region53: #{tpu_custom_call.1} parent=35 // pred_check
          %p357 = pneg %p356
        $region54: #{tpu_custom_call.1} parent=35 // pred_check_branch
          %359 = sbr.rel (%p357) target = $region56
        $region55: #{tpu_custom_call.1} parent=35 // pred_region
          %v360 = vld [vmem:[%s309] sm:$0xff]
          %v361 = vadd.f32 %v360, %v349
          %362 = vst [vmem:[%s309] sm:$0xff] %v361
        $region56: #{tpu_custom_call.1} parent=35 // pred_fallthru
          _
        // Predicated region
        $region57: #{tpu_custom_call.1} parent=35 // pred_check
          %p363 = pneg %p351
        $region58: #{tpu_custom_call.1} parent=35 // pred_check_branch
          %365 = sbr.rel (%p363) target = $region60
        $region59: #{tpu_custom_call.1} parent=35 // pred_region
          %v366 = vld [vmem:[%s309] sm:$0xff]
          %v367 = vld [vmem:[%s277] sm:$0x1]
          %v369 = vperm.slane %v367, 0
          %v371 = vadd.f32 %v366, %v369
          %v372 = vld [vmem:[%s313] sm:$0x1]
          %v373 = vsub.f32 0.0, %v371
          %v374 = vmul.f32 %v373, 1.442695
          %v375 = vpow.pop %v374
          %v377 = vperm.slane %v372, 0
          %v379 = vadd.f32 %v377, %v375
          %v380 = vrcp.pop %v379
          %v381 = vmul.f32 %v379, %v380
          %v382 = vsub.f32 1.0, %v381
          %v383 = vmul.f32 %v380, %v382
          %v384 = vadd.f32 %v380, %v383
          %vm385 = vweird.f32 %v379
          %vm386 = vweird.f32 %v380
          %vm387 = vmor %vm385, %vm386
          %v388 = vsel %vm387, %v380, %v384
          %v389 = vand.u32 2147483647, %v379
          %vm390 = vcmp.eq.f32.partialorder %v389, 8.507059e+37
          %v391 = vand.u32 %v379, 2147483648
          %v392 = vor.u32 1.1754944e-38, %v391
          %v393 = vsel %vm390, %v392, %v388
          %394 = vst [vmem:[%s309] sm:$0xff] %v393
        $region60: #{tpu_custom_call.1} parent=35 // pred_fallthru
          _
        %s395 = sand.u32 %s159, 1
        %s396 = scalar_lea.sflag [#allocation4], %s395
        %s397 = sand.u32 %s159, 1
        %s398 = smul.addr %s397, 8
        %s399 = scalar_lea.vmem [#allocation8], %s398
        // Predicated region
        $region61: #{tpu_custom_call.1} parent=35 // pred_check
          %p400 = pneg %p169
        $region62: #{tpu_custom_call.1} parent=35 // pred_check_branch
          %402 = sbr.rel (%p400) target = $region64
        $region63: #{tpu_custom_call.1} parent=35 // pred_region
          %404 = vsyncadd %s396, 0
          %s405 = smul.addr %s27, 2
          %s406 = sadd.s32 %s28, %s405
          %s407 = smul.addr %s406, 8
          %s408 = scalar_lea.hbm %s4, %s407
          %s410 = sshll.u32 %s399, 4
          %s411 = int_to_ptr.vmem [resolvable:$true] %s410
          %s412 = sshll.u32 %s408, 4
          %s413 = int_to_ptr.hbm [resolvable:$true] %s412
          %415 = dma.vmem_to_hbm [thread:$0]  %s411, 128, %s413, %s396
        $region64: #{tpu_custom_call.1} parent=35 // pred_fallthru
          _
      $region36: #{tpu_custom_call.1} parent=5 // pred_fallthru
        _
      %p416 = scmp.le.s32.totalorder 2, %s17
      // Predicated region
      $region65: #{tpu_custom_call.1} parent=5 // pred_check
        %p417 = pneg %p416
      $region66: #{tpu_custom_call.1} parent=5 // pred_check_branch
        %419 = sbr.rel (%p417) target = $region68
      $region67: #{tpu_custom_call.1} parent=5 // pred_region
        %s420 = ssub.s32 %s17, 2
        // Predicated region
        $region69: #{tpu_custom_call.1} parent=67 // pred_check
          %p421 = pneg %p175
        $region70: #{tpu_custom_call.1} parent=67 // pred_check_branch
          %423 = sbr.rel (%p421) target = $region72
        $region71: #{tpu_custom_call.1} parent=67 // pred_region
          %s424 = sand.u32 %s160, 1
          %s425 = scalar_lea.sflag [#allocation4], %s424
          %s426 = sand.u32 %s160, 1
          %s427 = smul.addr %s426, 8
          %s428 = scalar_lea.vmem [#allocation8], %s427
          %430 = dma.done %s425, 128
        $region72: #{tpu_custom_call.1} parent=67 // pred_fallthru
          _
      $region68: #{tpu_custom_call.1} parent=5 // pred_fallthru
        _
    $region6: #{tpu_custom_call.1} parent=1 // loop_footer
      %s21 = sadd.s32 1, %s17
    $region7: #{tpu_custom_call.1} parent=1 // loop_footer_branch
      %16 = sbr.rel target = $region3
    $region8: #{tpu_custom_call.1} parent=1 // loop_exit
      _
    %431 = vsyncpa [#allocation3], 1
    %s432 = scalar_lea.sflag [#allocation3], 1
    %433 = vsyncpa %s432, 1
    %434 = vsyncpa [#allocation6], 1
    %s435 = scalar_lea.sflag [#allocation6], 1
    %436 = vsyncpa %s435, 1
    %437 = vsyncpa [#allocation4], 1
    %s438 = scalar_lea.sflag [#allocation4], 1
    %439 = vsyncpa %s438, 1

</llo_original>
